<compile_context>
chip_gen: v6e
topology: v6e:2x2x1
jax: 0.10.0
libtpu: 0.0.40
codegen_flags: <defaults>
</compile_context>

<pallas_src>
import functools

import jax
import jax.numpy as jnp
from jax import lax
from jax.experimental import pallas as pl
from jax.experimental.pallas import tpu as pltpu

_LANES = 128
_TARGET_PAIR_BYTES = 8 * 1024 * 1024   # ~4 MiB per operand block (x2 buffers each)
_ACC_BUDGET_ELEMS = 8 * 1024           # accumulator ~8 vregs -> independent add chains
_VMEM_LIMIT_BYTES = 48 * 1024 * 1024   # safe on v5e/v6e (128 MiB) and v7x (64 MiB)

# TODO(synk): ToGrayscale source not provided; ITU-R BT.601 luma weights assumed.
_LUMA = (0.299, 0.587, 0.114)


def _min_sublanes(dtype):
    # Native sublane packing: f32 -> 8, bf16/f16 -> 16, int8/fp8 -> 32.
    return {4: 8, 2: 16, 1: 32}.get(jnp.dtype(dtype).itemsize, 8)


def _num_slices():
    """2 on dual-TensorCore parts (v7x); 1 elsewhere; unknown -> 2 (harmless)."""
    try:
        info = pltpu.get_tpu_info()
        for name in ("num_cores", "core_count", "num_tensorcores",
                     "tensor_core_count"):
            v = getattr(info, name, None)
            if v:
                return max(1, min(2, int(v)))
    except Exception:
        pass
    return 2


def _compiler_params():
    return pltpu.CompilerParams(
        dimension_semantics=("parallel", "arbitrary"),
        vmem_limit_bytes=_VMEM_LIMIT_BYTES)


def _pick_tiling(rows, row_pair_bytes, acc_cols, row_quant):
    """Pick (tile_rows, acc_rows): tile fits the VMEM byte budget, prefers
    64-row alignment; acc_rows divides tile_rows and stays within ~8 vregs."""
    budget_rows = _TARGET_PAIR_BYTES // row_pair_bytes
    tile_rows = 0
    for quant in (max(64, row_quant), row_quant):
        tr = (min(rows, budget_rows) // quant) * quant
        if tr >= quant:
            tile_rows = tr
            break
    if tile_rows == 0:
        return None  # too small (or too wide) for the kernel path
    acc_rows = 8
    for cand in (64, 32, 16):
        if cand * acc_cols <= _ACC_BUDGET_ELEMS and tile_rows % cand == 0:
            acc_rows = cand
            break
    return tile_rows, acc_rows


# ----------------------------------------------------------------------------
# Generic kernel: sum((p - g)^2) over a (rows, cols) view.
# ----------------------------------------------------------------------------
def _sq_diff_kernel(rows, tile_rows, acc_rows, blocks_per_slice,
                    p_ref, g_ref, out_ref, acc_ref):
    c = pl.program_id(0)   # slice (a TensorCore on dual-TC parts)
    j = pl.program_id(1)   # block within slice (reduction axis)
    cols = p_ref.shape[-1]

    @pl.when(j == 0)
    def _init():
        acc_ref[...] = jnp.zeros_like(acc_ref)

    # Nominal (unclamped) first row of this block; may overshoot `rows` for the
    # ragged final block and clamped duplicate steps (those rows mask to zero).
    block_row0 = (c * blocks_per_slice + j) * tile_rows

    def _accumulate(masked):
        d = p_ref[...].astype(jnp.float32) - g_ref[...].astype(jnp.float32)
        if masked:
            rowid = block_row0 + lax.broadcasted_iota(
                jnp.int32, (tile_rows, cols), 0)
            d = jnp.where(rowid < rows, d, 0.0)
        sq = d * d
        # Sublane-group reduction into acc_rows independent rows (pure VPU,
        # independent add chains; final cross-lane reduce happens in JAX).
        acc_ref[...] += jnp.sum(
            sq.reshape(tile_rows // acc_rows, acc_rows, cols), axis=0)

    @pl.when(block_row0 + tile_rows <= rows)
    def _full_block():
        _accumulate(masked=False)

    @pl.when(block_row0 + tile_rows > rows)
    def _ragged_block():
        _accumulate(masked=True)

    @pl.when(j == pl.num_programs(1) - 1)
    def _writeout():
        out_ref[0] = acc_ref[...]


def _sse_generic(p, g, num_slices):
    """Sum of squared differences of two same-shaped arrays."""
    n = p.size
    if n % _LANES == 0:
        rows, cols = n // _LANES, _LANES            # dense (rows, 128) view
    else:
        cols = p.shape[-1]                          # free (N*C*H, W) view
        rows = n // cols
    row_quant = max(_min_sublanes(p.dtype), _min_sublanes(g.dtype))
    cols_padded = -(-cols // _LANES) * _LANES
    pair_itemsize = jnp.dtype(p.dtype).itemsize + jnp.dtype(g.dtype).itemsize
    tiling = _pick_tiling(rows, cols_padded * pair_itemsize, cols_padded,
                          row_quant)
    if tiling is None:
        # Tiny (or pathologically wide) input: plain JAX, negligible cost.
        d = p.astype(jnp.float32) - g.astype(jnp.float32)
        return jnp.sum(d * d)
    tile_rows, acc_rows = tiling

    p2 = p.reshape(rows, cols)   # contiguous reshape: no copy, native dtype
    g2 = g.reshape(rows, cols)
    nblocks = -(-rows // tile_rows)
    bps = max(1, -(-nblocks // num_slices))
    last_block = nblocks - 1

    def in_map(c, j):
        # Clamp so steps past the real data re-read the last block; the kernel
        # masks their contribution to zero.
        return (jnp.minimum(c * bps + j, last_block), 0)

    partials = pl.pallas_call(
        functools.partial(_sq_diff_kernel, rows, tile_rows, acc_rows, bps),
        out_shape=jax.ShapeDtypeStruct((num_slices, acc_rows, cols),
                                       jnp.float32),
        grid_spec=pltpu.PrefetchScalarGridSpec(
            num_scalar_prefetch=0,
            grid=(num_slices, bps),
            in_specs=[
                pl.BlockSpec((tile_rows, cols), in_map),
                pl.BlockSpec((tile_rows, cols), in_map),
            ],
            out_specs=pl.BlockSpec((1, acc_rows, cols),
                                   lambda c, j: (c, 0, 0)),
            scratch_shapes=[pltpu.VMEM((acc_rows, cols), jnp.float32)],
        ),
        compiler_params=_compiler_params(),
    )(p2, g2)
    return jnp.sum(partials)


# ----------------------------------------------------------------------------
# Fused RGB->gray kernel: sum((gray(p) - gray(g))^2) without a gray HBM
# intermediate.  View: (N*3, H*W//128, 128); block: (3, tile_rows, 128).
# ----------------------------------------------------------------------------
def _rgb_sq_diff_kernel(s_rows, tile_rows, acc_rows, blocks_per_slice,
                        total_blocks, sr_blocks, w0, w1, w2,
                        p_ref, g_ref, out_ref, acc_ref):
    c = pl.program_id(0)
    j = pl.program_id(1)

    @pl.when(j == 0)
    def _init():
        acc_ref[...] = jnp.zeros_like(acc_ref)

    t_raw = c * blocks_per_slice + j
    t = jnp.minimum(t_raw, total_blocks - 1)
    sb = t % sr_blocks                 # spatial-row block within the image
    row0 = sb * tile_rows

    def _accumulate(masked):
        d = p_ref[...].astype(jnp.float32) - g_ref[...].astype(jnp.float32)
        # gray(p) - gray(g) == sum_c w_c * (p_c - g_c): pure VPU, no relayout.
        gd = d[0] * w0 + d[1] * w1 + d[2] * w2            # (tile_rows, 128)
        if masked:
            rowid = row0 + lax.broadcasted_iota(
                jnp.int32, (tile_rows, _LANES), 0)
            ok = jnp.logical_and(rowid < s_rows, t_raw < total_blocks)
            gd = jnp.where(ok, gd, 0.0)
        sq = gd * gd
        acc_ref[...] += jnp.sum(
            sq.reshape(tile_rows // acc_rows, acc_rows, _LANES), axis=0)

    is_full = jnp.logical_and(t_raw < total_blocks,
                              row0 + tile_rows <= s_rows)

    @pl.when(is_full)
    def _full_block():
        _accumulate(masked=False)

    @pl.when(jnp.logical_not(is_full))
    def _ragged_block():
        _accumulate(masked=True)

    @pl.when(j == pl.num_programs(1) - 1)
    def _writeout():
        out_ref[0] = acc_ref[...]


def _sse_rgb_gray_fused(p, g, num_slices):
    """Fused gray-conversion SSE; returns None if the input is too small."""
    N, _, H, W = p.shape
    s_rows = (H * W) // _LANES
    row_quant = max(_min_sublanes(p.dtype), _min_sublanes(g.dtype))
    pair_itemsize = jnp.dtype(p.dtype).itemsize + jnp.dtype(g.dtype).itemsize
    tiling = _pick_tiling(s_rows, 3 * _LANES * pair_itemsize, _LANES,
                          row_quant)
    if tiling is None:
        return None
    tile_rows, acc_rows = tiling

    p3 = p.reshape(N * 3, s_rows, _LANES)   # contiguous reshape: no copy
    g3 = g.reshape(N * 3, s_rows, _LANES)
    sr_blocks = -(-s_rows // tile_rows)
    total_blocks = N * sr_blocks
    bps = max(1, -(-total_blocks // num_slices))

    def in_map(c, j):
        t = jnp.minimum(c * bps + j, total_blocks - 1)
        return (t // sr_blocks, t % sr_blocks, 0)

    w0, w1, w2 = _LUMA
    partials = pl.pallas_call(
        functools.partial(_rgb_sq_diff_kernel, s_rows, tile_rows, acc_rows,
                          bps, total_blocks, sr_blocks, w0, w1, w2),
        out_shape=jax.ShapeDtypeStruct((num_slices, acc_rows, _LANES),
                                       jnp.float32),
        grid_spec=pltpu.PrefetchScalarGridSpec(
            num_scalar_prefetch=0,
            grid=(num_slices, bps),
            in_specs=[
                pl.BlockSpec((3, tile_rows, _LANES), in_map),
                pl.BlockSpec((3, tile_rows, _LANES), in_map),
            ],
            out_specs=pl.BlockSpec((1, acc_rows, _LANES),
                                   lambda c, j: (c, 0, 0)),
            scratch_shapes=[pltpu.VMEM((acc_rows, _LANES), jnp.float32)],
        ),
        compiler_params=_compiler_params(),
    )(p3, g3)
    return jnp.sum(partials)


# ----------------------------------------------------------------------------
# Wrapper: PSNR()(prediction, gt) with default constructor args.
# ----------------------------------------------------------------------------
def psnr_pallas(prediction, gt, grayscale=True):
    num_slices = _num_slices()
    if grayscale and prediction.ndim == 4 and prediction.shape[1] == 3:
        N, _, H, W = prediction.shape
        n_out = N * H * W                 # MSE is over the grayscale images
        sse = None
        if (H * W) % _LANES == 0:
            sse = _sse_rgb_gray_fused(prediction, gt, num_slices)
        if sse is None:
            # Small / non-128-aligned spatial extent: unfused fallback
            # (XLA grayscale, then the generic streaming kernel).
            w = jnp.asarray(_LUMA, dtype=jnp.float32).reshape(1, 3, 1, 1)
            pg = jnp.sum(prediction.astype(jnp.float32) * w, axis=1,
                         keepdims=True)
            gg = jnp.sum(gt.astype(jnp.float32) * w, axis=1, keepdims=True)
            sse = _sse_generic(pg, gg, num_slices)
    else:
        n_out = prediction.size
        sse = _sse_generic(prediction, gt, num_slices)

    # TODO(synk): scale_opt / trans_opt constructor branches (non-default ctor
    #             args) not implemented; defaults only.
    mse = sse / jnp.float32(n_out)          # reduction='mean'
    return -10.0 * jnp.log10(mse)           # PSNR


if __name__ == "__main__":
    key = jax.random.PRNGKey(0)

    def ref_psnr(p, g):
        if p.ndim == 4 and p.shape[1] == 3:
            w = jnp.asarray(_LUMA, dtype=jnp.float32).reshape(1, 3, 1, 1)
            p = jnp.sum(p.astype(jnp.float32) * w, axis=1, keepdims=True)
            g = jnp.sum(g.astype(jnp.float32) * w, axis=1, keepdims=True)
        d = p.astype(jnp.float32) - g.astype(jnp.float32)
        return -10.0 * jnp.log10(jnp.mean(d * d))

    cases = [
        ((2, 4, 16, 16), jnp.float32),    # primary: C != 3, generic dense (rows,128) path
        ((2, 3, 16, 32), jnp.float32),    # RGB, small spatial -> unfused fallback path
        ((1, 3, 64, 128), jnp.float32),   # RGB, H*W % 128 == 0 -> fused gray kernel
        ((2, 4, 16, 16), jnp.bfloat16),   # native low-precision streaming (no wrapper cast)
        ((1, 1, 72, 40), jnp.float32),    # numel % 128 != 0 -> (N*C*H, W) view + row mask
    ]

    psnr_fn = jax.jit(psnr_pallas)
    for shape, dtype in cases:
        key, k1, k2 = jax.random.split(key, 3)
        p = jax.random.uniform(k1, shape, dtype=jnp.float32).astype(dtype)
        g = jax.random.uniform(k2, shape, dtype=jnp.float32).astype(dtype)
        out = jax.block_until_ready(psnr_fn(p, g))
        ref = ref_psnr(p, g)
        assert jnp.allclose(out, ref, rtol=1e-4, atol=1e-5), (
            shape, dtype, float(out), float(ref))

    print("KERNEL_OK")
</pallas_src>

<mosaic_0001>
module attributes {stable_mosaic.version = 11 : i64} {
  func.func @_sq_diff_kernel(%arg0: i32, %arg1: i32, %arg2: memref<16x128xf32, #tpu.memory_space<vmem>>, %arg3: memref<16x128xf32, #tpu.memory_space<vmem>>, %arg4: memref<1x16x128xf32, #tpu.memory_space<vmem>>, %arg5: memref<16x128xf32, #tpu.memory_space<vmem>>) attributes {dimension_semantics = [#tpu.dimension_semantics<parallel>, #tpu.dimension_semantics<arbitrary>], iteration_bounds = array<i64: 2, 1>, scalar_prefetch = 0 : i64, scratch_operands = 1 : i64, tpu.core_type = #tpu.core_type<tc>, window_params = [{transform_indices = @transform_0, window_bounds = array<i64: 16, 128>}, {transform_indices = @transform_1, window_bounds = array<i64: 16, 128>}, {transform_indices = @transform_2, window_bounds = array<i64: 1, 16, 128>}]} {
    %c0_i32 = arith.constant 0 : i32
    %0 = arith.cmpi eq, %arg1, %c0_i32 : i32
    %1 = arith.extui %0 : i1 to i32
    %c0_i32_0 = arith.constant 0 : i32
    %2 = arith.cmpi ne, %1, %c0_i32_0 : i32
    scf.if %2 {
      %cst = arith.constant 0.000000e+00 : f32
      %17 = vector.broadcast %cst : f32 to vector<16x128xf32>
      %c0 = arith.constant 0 : index
      %c0_9 = arith.constant 0 : index
      %18 = vector.load %arg5[%c0, %c0_9] : memref<16x128xf32, #tpu.memory_space<vmem>>, vector<16x128xf32>
      tpu.vector_store %arg5[%c0, %c0_9], %17 {strides = array<i32>} : memref<16x128xf32, #tpu.memory_space<vmem>>, vector<16x128xf32>,
    } else {
    }
    %c1_i32 = arith.constant 1 : i32
    %3 = arith.muli %arg0, %c1_i32 : i32
    %4 = arith.addi %3, %arg1 : i32
    %c16_i32 = arith.constant 16 : i32
    %5 = arith.muli %4, %c16_i32 : i32
    %c16_i32_1 = arith.constant 16 : i32
    %6 = arith.addi %5, %c16_i32_1 : i32
    %c16_i32_2 = arith.constant 16 : i32
    %7 = arith.cmpi sle, %6, %c16_i32_2 : i32
    %8 = arith.extui %7 : i1 to i32
    %c0_i32_3 = arith.constant 0 : i32
    %9 = arith.cmpi ne, %8, %c0_i32_3 : i32
    scf.if %9 {
      %c0 = arith.constant 0 : index
      %c0_9 = arith.constant 0 : index
      %17 = vector.load %arg2[%c0, %c0_9] : memref<16x128xf32, #tpu.memory_space<vmem>>, vector<16x128xf32>
      %c0_10 = arith.constant 0 : index
      %c0_11 = arith.constant 0 : index
      %18 = vector.load %arg3[%c0_10, %c0_11] : memref<16x128xf32, #tpu.memory_space<vmem>>, vector<16x128xf32>
      %19 = arith.subf %17, %18 : vector<16x128xf32>
      %20 = arith.mulf %19, %19 : vector<16x128xf32>
      %c0_12 = arith.constant 0 : index
      %c0_13 = arith.constant 0 : index
      %21 = vector.load %arg5[%c0_12, %c0_13] : memref<16x128xf32, #tpu.memory_space<vmem>>, vector<16x128xf32>
      %22 = vector.shape_cast %20 : vector<16x128xf32> to vector<1x16x128xf32>
      %cst = arith.constant dense<0.000000e+00> : vector<16x128xf32>
      %23 = vector.multi_reduction <add>, %22, %cst [0] : vector<1x16x128xf32> to vector<16x128xf32>
      %24 = arith.addf %21, %23 : vector<16x128xf32>
      %c0_14 = arith.constant 0 : index
      %c0_15 = arith.constant 0 : index
      %25 = vector.load %arg5[%c0_14, %c0_15] : memref<16x128xf32, #tpu.memory_space<vmem>>, vector<16x128xf32>
      tpu.vector_store %arg5[%c0_14, %c0_15], %24 {strides = array<i32>} : memref<16x128xf32, #tpu.memory_space<vmem>>, vector<16x128xf32>,
    } else {
    }
    %c16_i32_4 = arith.constant 16 : i32
    %10 = arith.addi %5, %c16_i32_4 : i32
    %c16_i32_5 = arith.constant 16 : i32
    %11 = arith.cmpi sgt, %10, %c16_i32_5 : i32
    %12 = arith.extui %11 : i1 to i32
    %c0_i32_6 = arith.constant 0 : i32
    %13 = arith.cmpi ne, %12, %c0_i32_6 : i32
    scf.if %13 {
      %c0 = arith.constant 0 : index
      %c0_9 = arith.constant 0 : index
      %17 = vector.load %arg2[%c0, %c0_9] : memref<16x128xf32, #tpu.memory_space<vmem>>, vector<16x128xf32>
      %c0_10 = arith.constant 0 : index
      %c0_11 = arith.constant 0 : index
      %18 = vector.load %arg3[%c0_10, %c0_11] : memref<16x128xf32, #tpu.memory_space<vmem>>, vector<16x128xf32>
      %19 = arith.subf %17, %18 : vector<16x128xf32>
      %20 = tpu.iota {dimensions = array<i32: 0>} : vector<16x128xi32>
      %21 = vector.broadcast %5 : i32 to vector<16x128xi32>
      %22 = arith.addi %21, %20 : vector<16x128xi32>
      %c16_i32_12 = arith.constant 16 : i32
      %23 = vector.broadcast %c16_i32_12 : i32 to vector<16x128xi32>
      %24 = arith.cmpi slt, %22, %23 : vector<16x128xi32>
      %cst = arith.constant 0.000000e+00 : f32
      %25 = vector.broadcast %cst : f32 to vector<16x128xf32>
      %26 = arith.select %24, %19, %25 : vector<16x128xi1>, vector<16x128xf32>
      %27 = arith.mulf %26, %26 : vector<16x128xf32>
      %c0_13 = arith.constant 0 : index
      %c0_14 = arith.constant 0 : index
      %28 = vector.load %arg5[%c0_13, %c0_14] : memref<16x128xf32, #tpu.memory_space<vmem>>, vector<16x128xf32>
      %29 = vector.shape_cast %27 : vector<16x128xf32> to vector<1x16x128xf32>
      %cst_15 = arith.constant dense<0.000000e+00> : vector<16x128xf32>
      %30 = vector.multi_reduction <add>, %29, %cst_15 [0] : vector<1x16x128xf32> to vector<16x128xf32>
      %31 = arith.addf %28, %30 : vector<16x128xf32>
      %c0_16 = arith.constant 0 : index
      %c0_17 = arith.constant 0 : index
      %32 = vector.load %arg5[%c0_16, %c0_17] : memref<16x128xf32, #tpu.memory_space<vmem>>, vector<16x128xf32>
      tpu.vector_store %arg5[%c0_16, %c0_17], %31 {strides = array<i32>} : memref<16x128xf32, #tpu.memory_space<vmem>>, vector<16x128xf32>,
    } else {
    }
    %c0_i32_7 = arith.constant 0 : i32
    %14 = arith.cmpi eq, %arg1, %c0_i32_7 : i32
    %15 = arith.extui %14 : i1 to i32
    %c0_i32_8 = arith.constant 0 : i32
    %16 = arith.cmpi ne, %15, %c0_i32_8 : i32
    scf.if %16 {
      %c0 = arith.constant 0 : index
      %c0_9 = arith.constant 0 : index
      %17 = vector.load %arg5[%c0, %c0_9] : memref<16x128xf32, #tpu.memory_space<vmem>>, vector<16x128xf32>
      %c0_10 = arith.constant 0 : index
      %c0_11 = arith.constant 0 : index
      %c0_12 = arith.constant 0 : index
      %18 = vector.load %arg4[%c0_10, %c0_11, %c0_12] : memref<1x16x128xf32, #tpu.memory_space<vmem>>, vector<1x16x128xf32>
      %19 = vector.shape_cast %18 : vector<1x16x128xf32> to vector<16x128xf32>
      %20 = vector.shape_cast %17 : vector<16x128xf32> to vector<1x16x128xf32>
      tpu.vector_store %arg4[%c0_10, %c0_11, %c0_12], %20 {strides = array<i32>} : memref<1x16x128xf32, #tpu.memory_space<vmem>>, vector<1x16x128xf32>,
    } else {
    }
    return
  }
  func.func @transform_0(%arg0: i32, %arg1: i32) -> (i32, i32) {
    %c1_i32 = arith.constant 1 : i32
    %0 = arith.muli %arg0, %c1_i32 : i32
    %1 = arith.addi %0, %arg1 : i32
    %c0_i32 = arith.constant 0 : i32
    %2 = arith.minsi %1, %c0_i32 : i32
    %c0_i32_0 = arith.constant 0 : i32
    %c0_i32_1 = arith.constant 0 : i32
    return %2, %c0_i32_0 : i32, i32
  }
  func.func @transform_1(%arg0: i32, %arg1: i32) -> (i32, i32) {
    %c1_i32 = arith.constant 1 : i32
    %0 = arith.muli %arg0, %c1_i32 : i32
    %1 = arith.addi %0, %arg1 : i32
    %c0_i32 = arith.constant 0 : i32
    %2 = arith.minsi %1, %c0_i32 : i32
    %c0_i32_0 = arith.constant 0 : i32
    %c0_i32_1 = arith.constant 0 : i32
    return %2, %c0_i32_0 : i32, i32
  }
  func.func @transform_2(%arg0: i32, %arg1: i32) -> (i32, i32, i32) {
    %c0_i32 = arith.constant 0 : i32
    %c0_i32_0 = arith.constant 0 : i32
    %c0_i32_1 = arith.constant 0 : i32
    return %arg0, %c0_i32, %c0_i32_0 : i32, i32, i32
  }
}

</mosaic_0001>

<llo_original>
// kernel: psnr_pallas.1
$region0: #{psnr_pallas.1}
  #allocation0 [shape = 'u32[]', space=smem, size = 0x4, offset = 0x4, fixed_abs, tag = 'smem constant byte address 0x4 - core index']
  #allocation1 [shape = 'u32[144,128]{1,0:T(1,128)}', space=vmem, size = 0x12000, scoped, tag = 'internal scratch']
  #allocation2 [shape = 'f32[16,128]{1,0:T(8,128)}', space=vmem, size = 0x2000, scoped, tag = 'scratch operand']
  %s0 = inlined_call_operand.vmem [shape: f32[16,128], index: 0, kind: input, shape index: {}]
  %s1 = inlined_call_operand.vmem [shape: f32[16,128], index: 1, kind: input, shape index: {}]
  %s2 = inlined_call_operand.vmem [shape: f32[2,16,128], index: 2, kind: output, shape index: {}]
  %s3 = sld [smem:[#allocation0]]
  $region57: #{psnr_pallas.1} parent=0
    _
  %s5 = ssub.s32 1, %s3
  %s6 = scalar_select 0, %s5, %s3
  loop: start=0, step=1, limit=4
  $region2: #{psnr_pallas.1} parent=0 // loop_pre_header
    _
  $region3: #{psnr_pallas.1} parent=0 // loop_header
    %s8 = sphi 0, %s12
    %p9 = scmp.ge.s32.totalorder %s8, 4
    %s15 = sphi 0, %s27
    %s16 = sphi 0, %s23
    %s17 = sphi 0, %s15
    %s18 = sphi 0, %s16
    %s19 = sphi 0, %s17
    %s20 = sphi 0, %s18
    %s36 = sphi 0, %s38
    %s39 = sphi 0, %s36
    %s40 = sphi 0, %s39
    %s56 = sphi 0, %s40
    %s68 = sphi 0, %s70
    %s71 = sphi 0, %s68
    %s72 = sphi 0, %s71
    %s88 = sphi 0, %s72
    %s94 = sphi 0, %s96
    %s97 = sphi 0, %s94
    %s98 = sphi 0, %s97
    %s114 = sphi 0, %s98
  $region4: #{psnr_pallas.1} parent=0 // loop_header_branch
    %11 = sbr.rel (%p9) target = $region8
  $region5: #{psnr_pallas.1} parent=0 // loop_body
    %s13 = ssub.s32 %s8, 1
    %s14 = ssub.s32 %s8, 2
    %s21 = sadd.s32 1, %s16
    %p22 = scmp.ge.s32.totalorder %s21, 1
    %s23 = scalar_select %p22, 0, %s21
    %s24 = sadd.s32 1, %s15
    %s25 = scalar_select %p22, %s24, %s15
    %p26 = scmp.ge.s32.totalorder %s25, 2
    %s27 = scalar_select %p26, 0, %s25
    %s28 = sadd.s32 %s15, %s16
    %p29 = scmp.lt.s32.totalorder %s28, 0
    %s30 = scalar_select %p29, %s28, 0
    %s31 = sadd.s32 %s27, %s23
    %p32 = scmp.lt.s32.totalorder %s31, 0
    %s33 = scalar_select %p32, %s31, 0
    %s34 = ssub.s32 %s30, %s33
    %p35 = scmp.eq.s32.totalorder %s34, 0
    %s37 = sadd.s32 %s36, 1
    %s38 = scalar_select %p35, %s36, %s37
    %p41 = pneg %p35
    %p42 = scmp.eq.s32.totalorder %s8, 1
    %p43 = por %p41, %p42
    %p44 = scmp.ne.s32.totalorder %s36, %s39
    %p45 = scmp.eq.s32.totalorder %s8, 0
    %p46 = por %p44, %p45
    %p47 = scmp.ne.s32.totalorder %s36, %s39
    %p48 = scmp.eq.s32.totalorder %s13, 1
    %p49 = por %p47, %p48
    %p50 = scmp.ne.s32.totalorder %s39, %s40
    %p51 = scmp.eq.s32.totalorder %s13, 0
    %p52 = por %p50, %p51
    %p53 = scmp.ne.s32.totalorder %s39, %s40
    %p54 = scmp.eq.s32.totalorder %s14, 1
    %p55 = por %p53, %p54
    %p57 = scmp.ne.s32.totalorder %s40, %s56
    %p58 = scmp.eq.s32.totalorder %s14, 0
    %p59 = por %p57, %p58
    %s60 = sadd.s32 %s15, %s16
    %p61 = scmp.lt.s32.totalorder %s60, 0
    %s62 = scalar_select %p61, %s60, 0
    %s63 = sadd.s32 %s27, %s23
    %p64 = scmp.lt.s32.totalorder %s63, 0
    %s65 = scalar_select %p64, %s63, 0
    %s66 = ssub.s32 %s62, %s65
    %p67 = scmp.eq.s32.totalorder %s66, 0
    %s69 = sadd.s32 %s68, 1
    %s70 = scalar_select %p67, %s68, %s69
    %p73 = pneg %p67
    %p74 = scmp.eq.s32.totalorder %s8, 1
    %p75 = por %p73, %p74
    %p76 = scmp.ne.s32.totalorder %s68, %s71
    %p77 = scmp.eq.s32.totalorder %s8, 0
    %p78 = por %p76, %p77
    %p79 = scmp.ne.s32.totalorder %s68, %s71
    %p80 = scmp.eq.s32.totalorder %s13, 1
    %p81 = por %p79, %p80
    %p82 = scmp.ne.s32.totalorder %s71, %s72
    %p83 = scmp.eq.s32.totalorder %s13, 0
    %p84 = por %p82, %p83
    %p85 = scmp.ne.s32.totalorder %s71, %s72
    %p86 = scmp.eq.s32.totalorder %s14, 1
    %p87 = por %p85, %p86
    %p89 = scmp.ne.s32.totalorder %s72, %s88
    %p90 = scmp.eq.s32.totalorder %s14, 0
    %p91 = por %p89, %p90
    %s92 = ssub.s32 %s15, %s27
    %p93 = scmp.eq.s32.totalorder %s92, 0
    %s95 = sadd.s32 %s94, 1
    %s96 = scalar_select %p93, %s94, %s95
    %p99 = pneg %p93
    %p100 = scmp.eq.s32.totalorder %s8, 1
    %p101 = por %p99, %p100
    %p102 = scmp.ne.s32.totalorder %s94, %s97
    %p103 = scmp.eq.s32.totalorder %s8, 0
    %p104 = por %p102, %p103
    %p105 = scmp.ne.s32.totalorder %s94, %s97
    %p106 = scmp.eq.s32.totalorder %s13, 1
    %p107 = por %p105, %p106
    %p108 = scmp.ne.s32.totalorder %s97, %s98
    %p109 = scmp.eq.s32.totalorder %s13, 0
    %p110 = por %p108, %p109
    %p111 = scmp.ne.s32.totalorder %s97, %s98
    %p112 = scmp.eq.s32.totalorder %s14, 1
    %p113 = por %p111, %p112
    %p115 = scmp.ne.s32.totalorder %s98, %s114
    %p116 = scmp.eq.s32.totalorder %s14, 0
    %p117 = por %p115, %p116
    %p118 = scmp.le.s32.totalorder 1, %s8
    %p119 = scmp.lt.s32.totalorder %s8, 3
    %p120 = pnand %p118, %p119
    %p121 = pneg %p120
    // Predicated region
    $region9: #{psnr_pallas.1} parent=5 // pred_check
      _
    $region10: #{psnr_pallas.1} parent=5 // pred_check_branch
      %123 = sbr.rel (%p120) target = $region12
    $region11: #{psnr_pallas.1} parent=5 // pred_region
      %s124 = ssub.s32 %s8, 1
    $region12: #{psnr_pallas.1} parent=5 // pred_fallthru
      _
    %p125 = scmp.lt.s32.totalorder %s8, 2
    // Predicated region
    $region13: #{psnr_pallas.1} parent=5 // pred_check
      %p126 = pneg %p125
    $region14: #{psnr_pallas.1} parent=5 // pred_check_branch
      %128 = sbr.rel (%p126) target = $region16
    $region15: #{psnr_pallas.1} parent=5 // pred_region
      // Predicated region
      $region17: #{psnr_pallas.1} parent=15 // pred_check
        %p129 = pneg %p46
      $region18: #{psnr_pallas.1} parent=15 // pred_check_branch
        %131 = sbr.rel (%p129) target = $region20
      $region19: #{psnr_pallas.1} parent=15 // pred_region
        %s132 = sadd.s32 %s15, %s16
        %p133 = scmp.lt.s32.totalorder %s132, 0
        %s134 = scalar_select %p133, %s132, 0
        %s135 = smul.u32 2, %s134
        %p136 = scmp.lt.s32.totalorder %s135, 1
        %s137 = scalar_select %p136, %s135, 1
        %s138 = smul.addr %s137, 8
        %s139 = scalar_lea.vmem %s0, %s138
        %s140 = sadd.s32 %s15, %s16
        %p141 = scmp.lt.s32.totalorder %s140, 0
        %s142 = scalar_select %p141, %s140, 0
        %s143 = smul.u32 2, %s142
      $region20: #{psnr_pallas.1} parent=15 // pred_fallthru
        _
      // Predicated region
      $region21: #{psnr_pallas.1} parent=15 // pred_check
        %p144 = pneg %p78
      $region22: #{psnr_pallas.1} parent=15 // pred_check_branch
        %146 = sbr.rel (%p144) target = $region24
      $region23: #{psnr_pallas.1} parent=15 // pred_region
        %s147 = sadd.s32 %s15, %s16
        %p148 = scmp.lt.s32.totalorder %s147, 0
        %s149 = scalar_select %p148, %s147, 0
        %s150 = smul.u32 2, %s149
        %p151 = scmp.lt.s32.totalorder %s150, 1
        %s152 = scalar_select %p151, %s150, 1
        %s153 = smul.addr %s152, 8
        %s154 = scalar_lea.vmem %s1, %s153
        %s155 = sadd.s32 %s15, %s16
        %p156 = scmp.lt.s32.totalorder %s155, 0
        %s157 = scalar_select %p156, %s155, 0
        %s158 = smul.u32 2, %s157
      $region24: #{psnr_pallas.1} parent=15 // pred_fallthru
        _
    $region16: #{psnr_pallas.1} parent=5 // pred_fallthru
      _
    %p159 = scmp.le.s32.totalorder 1, %s8
    %p160 = scmp.lt.s32.totalorder %s8, 3
    %p161 = pnand %p159, %p160
    %p162 = pneg %p161
    // Predicated region
    $region25: #{psnr_pallas.1} parent=5 // pred_check
      _
    $region26: #{psnr_pallas.1} parent=5 // pred_check_branch
      %164 = sbr.rel (%p161) target = $region28
    $region27: #{psnr_pallas.1} parent=5 // pred_region
      %s165 = ssub.s32 %s8, 1
      %s166 = sadd.s32 %s17, %s18
      %p167 = scmp.lt.s32.totalorder %s166, 0
      %s168 = scalar_select %p167, %s166, 0
      %s169 = smul.u32 2, %s168
      %p170 = scmp.lt.s32.totalorder %s169, 1
      %s171 = scalar_select %p170, %s169, 1
      %s172 = smul.addr %s171, 8
      %s173 = scalar_lea.vmem %s0, %s172
      %p174 = pneg %p52
      %p175 = pneg %p49
      %s176 = sadd.s32 %s17, %s18
      %p177 = scmp.lt.s32.totalorder %s176, 0
      %s178 = scalar_select %p177, %s176, 0
      %s179 = smul.u32 2, %s178
      %p180 = scmp.lt.s32.totalorder %s179, 1
      %s181 = scalar_select %p180, %s179, 1
      %s182 = smul.addr %s181, 8
      %s183 = scalar_lea.vmem %s1, %s182
      %p184 = pneg %p84
      %p185 = pneg %p81
      %p186 = pneg %p110
      %p187 = pneg %p107
      %p188 = scmp.lt.s32.totalorder %s17, 1
      %s189 = scalar_select %p188, %s17, 1
      %s190 = smul.addr %s189, 2
      %s191 = smul.addr %s190, 8
      %s192 = scalar_lea.vmem %s2, %s191
      %s193 = sadd.s32 %s17, %s18
      %p194 = scmp.lt.s32.totalorder %s193, 0
      %s195 = scalar_select %p194, %s193, 0
      %s196 = smul.u32 2, %s195
      %p197 = scmp.lt.s32.totalorder %s196, 1
      %s198 = scalar_select %p197, %s196, 1
      %s199 = smul.addr %s198, 8
      %s200 = scalar_lea.vmem %s0, %s199
      %s201 = sadd.s32 %s17, %s18
      %p202 = scmp.lt.s32.totalorder %s201, 0
      %s203 = scalar_select %p202, %s201, 0
      %s204 = smul.u32 2, %s203
      %s205 = sadd.s32 %s17, %s18
      %p206 = scmp.lt.s32.totalorder %s205, 0
      %s207 = scalar_select %p206, %s205, 0
      %s208 = smul.u32 2, %s207
      %p209 = scmp.lt.s32.totalorder %s208, 1
      %s210 = scalar_select %p209, %s208, 1
      %s211 = smul.addr %s210, 8
      %s212 = scalar_lea.vmem %s1, %s211
      %s213 = sadd.s32 %s17, %s18
      %p214 = scmp.lt.s32.totalorder %s213, 0
      %s215 = scalar_select %p214, %s213, 0
      %s216 = smul.u32 2, %s215
      %p217 = scmp.lt.s32.totalorder %s17, 1
      %s218 = scalar_select %p217, %s17, 1
      %s219 = smul.addr %s218, 2
      %s220 = smul.addr %s219, 8
      %s221 = scalar_lea.vmem %s2, %s220
      %p222 = scmp.eq.s32.totalorder %s18, 0
      // Predicated region
      $region29: #{psnr_pallas.1} parent=27 // pred_check
        %p223 = pneg %p222
      $region30: #{psnr_pallas.1} parent=27 // pred_check_branch
        %225 = sbr.rel (%p223) target = $region32
      $region31: #{psnr_pallas.1} parent=27 // pred_region
        %226 = vst [vmem:[#allocation2] sm:$0xff] 0.0
        %227 = vst [vmem:[#allocation2 + $0x8] sm:$0xff] 0.0
      $region32: #{psnr_pallas.1} parent=27 // pred_fallthru
        _
      %s228 = sadd.s32 %s17, %s18
      %s229 = smul.u32 %s228, 16
      %s230 = sadd.s32 %s229, 16
      %p231 = scmp.le.s32.totalorder %s230, 16
      // Predicated region
      $region33: #{psnr_pallas.1} parent=27 // pred_check
        %p232 = pneg %p231
      $region34: #{psnr_pallas.1} parent=27 // pred_check_branch
        %234 = sbr.rel (%p232) target = $region36
      $region35: #{psnr_pallas.1} parent=27 // pred_region
        %v235 = vld [vmem:[%s200] sm:$0xff]
        %v236 = vld [vmem:[%s200 + $0x8] sm:$0xff]
        %v237 = vld [vmem:[%s212] sm:$0xff]
        %v238 = vld [vmem:[%s212 + $0x8] sm:$0xff]
        %v239 = vsub.f32 %v235, %v237
        %v240 = vsub.f32 %v236, %v238
        %v241 = vmul.f32 %v239, %v239
        %v242 = vmul.f32 %v240, %v240
        %v243 = vld [vmem:[#allocation2] sm:$0xff]
        %v244 = vld [vmem:[#allocation2 + $0x8] sm:$0xff]
        %v245 = vadd.f32 %v241, 0.0
        %v246 = vadd.f32 %v242, 0.0
        %v247 = vadd.f32 %v243, %v245
        %v248 = vadd.f32 %v244, %v246
        %249 = vst [vmem:[#allocation2] sm:$0xff] %v247
        %250 = vst [vmem:[#allocation2 + $0x8] sm:$0xff] %v248
      $region36: #{psnr_pallas.1} parent=27 // pred_fallthru
        _
      %p251 = scmp.gt.s32.totalorder %s230, 16
      // Predicated region
      $region37: #{psnr_pallas.1} parent=27 // pred_check
        %p252 = pneg %p251
      $region38: #{psnr_pallas.1} parent=27 // pred_check_branch
        %254 = sbr.rel (%p252) target = $region40
      $region39: #{psnr_pallas.1} parent=27 // pred_region
        %v255 = vld [vmem:[%s200] sm:$0xff]
        %v256 = vld [vmem:[%s200 + $0x8] sm:$0xff]
        %v257 = vld [vmem:[%s212] sm:$0xff]
        %v258 = vld [vmem:[%s212 + $0x8] sm:$0xff]
        %v259 = vsub.f32 %v255, %v257
        %v260 = vsub.f32 %v256, %v258
        %v261 = vlaneseq
        %v262 = vshrl.u32 %v261, 7
        %v263 = vadd.s32 %v262, 8
        %v264 = vstv %s229
        %v265 = vadd.s32 %v264, %v262
        %v266 = vadd.s32 %v264, %v263
        %vm267 = vcmp.lt.s32.totalorder %v265, 16
        %vm268 = vcmp.lt.s32.totalorder %v266, 16
        %v269 = vsel %vm267, %v259, 0.0
        %v270 = vsel %vm268, %v260, 0.0
        %v271 = vmul.f32 %v269, %v269
        %v272 = vmul.f32 %v270, %v270
        %v273 = vld [vmem:[#allocation2] sm:$0xff]
        %v274 = vld [vmem:[#allocation2 + $0x8] sm:$0xff]
        %v275 = vadd.f32 %v271, 0.0
        %v276 = vadd.f32 %v272, 0.0
        %v277 = vadd.f32 %v273, %v275
        %v278 = vadd.f32 %v274, %v276
        %279 = vst [vmem:[#allocation2] sm:$0xff] %v277
        %280 = vst [vmem:[#allocation2 + $0x8] sm:$0xff] %v278
      $region40: #{psnr_pallas.1} parent=27 // pred_fallthru
        _
      // Predicated region
      $region41: #{psnr_pallas.1} parent=27 // pred_check
        %p281 = pneg %p222
      $region42: #{psnr_pallas.1} parent=27 // pred_check_branch
        %283 = sbr.rel (%p281) target = $region44
      $region43: #{psnr_pallas.1} parent=27 // pred_region
        %v284 = vld [vmem:[#allocation2] sm:$0xff]
        %v285 = vld [vmem:[#allocation2 + $0x8] sm:$0xff]
        %286 = vst [vmem:[%s221] sm:$0xff] %v284
        %287 = vst [vmem:[%s221 + $0x8] sm:$0xff] %v285
      $region44: #{psnr_pallas.1} parent=27 // pred_fallthru
        _
      %p288 = scmp.lt.s32.totalorder %s17, 1
      %s289 = scalar_select %p288, %s17, 1
      %s290 = smul.addr %s289, 2
      %s291 = smul.addr %s290, 8
      %s292 = scalar_lea.vmem %s2, %s291
      // Predicated region
      $region45: #{psnr_pallas.1} parent=27 // pred_check
        %p293 = pneg %p107
      $region46: #{psnr_pallas.1} parent=27 // pred_check_branch
        %295 = sbr.rel (%p293) target = $region48
      $region47: #{psnr_pallas.1} parent=27 // pred_region
        _
      $region48: #{psnr_pallas.1} parent=27 // pred_fallthru
        _
    $region28: #{psnr_pallas.1} parent=5 // pred_fallthru
      _
    %p296 = scmp.le.s32.totalorder 2, %s8
    // Predicated region
    $region49: #{psnr_pallas.1} parent=5 // pred_check
      %p297 = pneg %p296
    $region50: #{psnr_pallas.1} parent=5 // pred_check_branch
      %299 = sbr.rel (%p297) target = $region52
    $region51: #{psnr_pallas.1} parent=5 // pred_region
      %s300 = ssub.s32 %s8, 2
      // Predicated region
      $region53: #{psnr_pallas.1} parent=51 // pred_check
        %p301 = pneg %p113
      $region54: #{psnr_pallas.1} parent=51 // pred_check_branch
        %303 = sbr.rel (%p301) target = $region56
      $region55: #{psnr_pallas.1} parent=51 // pred_region
        %p304 = scmp.lt.s32.totalorder %s19, 1
        %s305 = scalar_select %p304, %s19, 1
        %s306 = smul.addr %s305, 2
        %s307 = smul.addr %s306, 8
        %s308 = scalar_lea.vmem %s2, %s307
      $region56: #{psnr_pallas.1} parent=51 // pred_fallthru
        _
    $region52: #{psnr_pallas.1} parent=5 // pred_fallthru
      _
  $region6: #{psnr_pallas.1} parent=0 // loop_footer
    %s12 = sadd.s32 1, %s8
  $region7: #{psnr_pallas.1} parent=0 // loop_footer_branch
    %7 = sbr.rel target = $region3
  $region8: #{psnr_pallas.1} parent=0 // loop_exit
    _

</llo_original>
